<compile_context>
chip_gen: v7x
topology: tpu7x:2x2x1
jax: 0.10.0
libtpu: 0.0.40
codegen_flags: <defaults>
</compile_context>

<pallas_src>
import jax
import jax.numpy as jnp
from jax import lax
from jax.experimental import pallas as pl
from jax.experimental.pallas import tpu as pltpu


def basic_block_kernel(x_ref, w1_ref, b1_ref, w2_ref, b2_ref, o_ref):
    """One batch element per grid step, lane-dense (H, L=W*C) layout.

    x_ref  : (1, H, L) bf16  input rows
    w1_ref : (3, L, L) bf16  conv1 block-banded weights (dy taps), BN1 scale folded
    b1_ref : (1, L)    f32   BN1 bias tiled to lane layout
    w2_ref : (3, L, L) bf16  conv2 block-banded weights, BN2 scale folded
    b2_ref : (1, L)    f32   BN2 bias tiled to lane layout
    o_ref  : (1, H, L) f32   output rows
    """
    H, L = x_ref.shape[1], x_ref.shape[2]

    def band_conv3x3(rows, w_ref):
        # rows: (H, L) bf16.  out[h] = sum_dy rows[h + dy - 1] @ w_ref[dy]
        # (zero pad along H handled by the shifted adds below; zero pad along
        #  W is baked into the band structure of w_ref).
        t0 = jnp.dot(rows, w_ref[0], preferred_element_type=jnp.float32)
        t1 = jnp.dot(rows, w_ref[1], preferred_element_type=jnp.float32)
        t2 = jnp.dot(rows, w_ref[2], preferred_element_type=jnp.float32)
        zrow = jnp.zeros((1, L), jnp.float32)
        up = jnp.concatenate([zrow, t0[:H - 1, :]], axis=0)   # uses rows[h-1]
        dn = jnp.concatenate([t2[1:, :], zrow], axis=0)       # uses rows[h+1]
        return t1 + up + dn

    x = x_ref[0]                                               # (H, L) bf16
    out1 = band_conv3x3(x, w1_ref) + b1_ref[...]               # conv1 + BN1
    out1 = jnp.maximum(out1, 0.0)                              # ReLU
    out2 = band_conv3x3(out1.astype(jnp.bfloat16), w2_ref) + b2_ref[...]
    res = jnp.maximum(out2 + x.astype(jnp.float32), 0.0)       # +identity, ReLU
    o_ref[...] = res.reshape(1, H, L)


def basic_block_pallas(x_nhwc, w1_hwio, bn1, w2_hwio, bn2, eps=1e-5):
    """x_nhwc: (B, H, W, C).  Returns (B, H, W, C) float32."""
    B, H, W, C = x_nhwc.shape
    P = w1_hwio.shape[-1]
    assert C == P, "identity add requires inplanes == planes (no downsample)"
    L = W * C

    def fold(gamma, beta, mean, var):
        s = gamma / jnp.sqrt(var + eps)
        return s, beta - mean * s

    s1, b1 = fold(*bn1)
    s2, b2 = fold(*bn2)

    def band(w_hwio, scale):
        # (3, 3, Cin, Cout) -> (3, W*Cin, W*Cout) block-banded matrices, one
        # per dy tap, with the BN scale folded into the output channel.
        # Built once at setup time in the wrapper (trace-time python loop).
        Kh, Kw, Cin, Cout = w_hwio.shape
        ws = (w_hwio * scale[None, None, None, :]).astype(jnp.float32)
        m = jnp.zeros((Kh, W * Cin, W * Cout), jnp.float32)
        for dx in range(Kw):
            for wi in range(W):                 # input column wi feeds output wo
                wo = wi - dx + 1                # cross-correlation, pad = 1
                if 0 <= wo < W:
                    m = m.at[:, wi * Cin:(wi + 1) * Cin,
                             wo * Cout:(wo + 1) * Cout].set(ws[:, dx])
        return m.astype(jnp.bfloat16)

    w1b = band(w1_hwio, s1)
    w2b = band(w2_hwio, s2)
    b1l = jnp.tile(b1, W).reshape(1, L).astype(jnp.float32)
    b2l = jnp.tile(b2, W).reshape(1, L).astype(jnp.float32)

    # pure reshape (no transpose, no pad): lane index = w*C + c
    x_rows = x_nhwc.reshape(B, H, L).astype(jnp.bfloat16)

    out = pl.pallas_call(
        basic_block_kernel,
        out_shape=jax.ShapeDtypeStruct((B, H, L), jnp.float32),
        grid_spec=pltpu.PrefetchScalarGridSpec(
            num_scalar_prefetch=0,
            grid=(B,),
            in_specs=[
                pl.BlockSpec((1, H, L), lambda b: (b, 0, 0)),
                pl.BlockSpec((3, L, L), lambda b: (0, 0, 0)),
                pl.BlockSpec((1, L), lambda b: (0, 0)),
                pl.BlockSpec((3, L, L), lambda b: (0, 0, 0)),
                pl.BlockSpec((1, L), lambda b: (0, 0)),
            ],
            out_specs=pl.BlockSpec((1, H, L), lambda b: (b, 0, 0)),
        ),
        compiler_params=pltpu.CompilerParams(dimension_semantics=("parallel",)),
    )(x_rows, w1b, b1l, w2b, b2l)
    return out.reshape(B, H, W, P)


def basic_block_ref(x_nhwc, w1_hwio, bn1, w2_hwio, bn2, eps=1e-5):
    """Plain-JAX reference (mirrors PyTorch eval-mode BasicBlock forward)."""
    def bn(x, gamma, beta, mean, var):
        return (x - mean) / jnp.sqrt(var + eps) * gamma + beta

    dn = ("NHWC", "HWIO", "NHWC")
    out = lax.conv_general_dilated(x_nhwc, w1_hwio, (1, 1), "SAME",
                                   dimension_numbers=dn)
    out = jnp.maximum(bn(out, *bn1), 0.0)
    out = lax.conv_general_dilated(out, w2_hwio, (1, 1), "SAME",
                                   dimension_numbers=dn)
    out = bn(out, *bn2)
    return jnp.maximum(out + x_nhwc, 0.0)


if __name__ == "__main__":
    B, C, H, W = 2, 8, 16, 16        # inplanes = planes = 8, stride = 1, no downsample
    key = jax.random.PRNGKey(0)
    ks = jax.random.split(key, 11)

    # input in PyTorch NCHW convention; snap to bf16-representable values so the
    # f32 reference and the bf16-fed kernel see identical inputs.
    x_nchw = jax.random.normal(ks[0], (B, C, H, W), dtype=jnp.float32)
    x_nchw = x_nchw.astype(jnp.bfloat16).astype(jnp.float32)

    # conv weights in PyTorch OIHW convention, then converted to HWIO
    w1_oihw = 0.1 * jax.random.normal(ks[1], (C, C, 3, 3), dtype=jnp.float32)
    w2_oihw = 0.1 * jax.random.normal(ks[2], (C, C, 3, 3), dtype=jnp.float32)
    w1_hwio = jnp.transpose(w1_oihw, (2, 3, 1, 0))
    w2_hwio = jnp.transpose(w2_oihw, (2, 3, 1, 0))

    # BN params: (gamma, beta, running_mean, running_var)
    bn1 = (1.0 + 0.1 * jax.random.normal(ks[3], (C,)),
           0.1 * jax.random.normal(ks[4], (C,)),
           0.1 * jax.random.normal(ks[5], (C,)),
           jnp.abs(jax.random.normal(ks[6], (C,))) + 0.5)
    bn2 = (1.0 + 0.1 * jax.random.normal(ks[7], (C,)),
           0.1 * jax.random.normal(ks[8], (C,)),
           0.1 * jax.random.normal(ks[9], (C,)),
           jnp.abs(jax.random.normal(ks[10], (C,))) + 0.5)

    # NCHW -> NHWC for the kernel
    x_nhwc = jnp.transpose(x_nchw, (0, 2, 3, 1))

    out_nhwc = basic_block_pallas(x_nhwc, w1_hwio, bn1, w2_hwio, bn2)
    out_nhwc = jax.block_until_ready(out_nhwc)
    out_nchw = jnp.transpose(out_nhwc, (0, 3, 1, 2))  # back to PyTorch layout

    ref_nhwc = basic_block_ref(x_nhwc, w1_hwio, bn1, w2_hwio, bn2)
    assert out_nchw.shape == (B, C, H, W)
    # bf16 matmul operands => looser tolerance than the pure-f32 version
    max_err = float(jnp.max(jnp.abs(out_nhwc - ref_nhwc)))
    assert jnp.allclose(out_nhwc, ref_nhwc, rtol=5e-2, atol=5e-2), max_err

    print("KERNEL_OK")
</pallas_src>

<mosaic_0001>
module attributes {stable_mosaic.version = 11 : i64} {
  func.func @basic_block_kernel(%arg0: i32, %arg1: memref<1x16x128xbf16, #tpu.memory_space<vmem>>, %arg2: memref<3x128x128xbf16, #tpu.memory_space<vmem>>, %arg3: memref<1x128xf32, #tpu.memory_space<vmem>>, %arg4: memref<3x128x128xbf16, #tpu.memory_space<vmem>>, %arg5: memref<1x128xf32, #tpu.memory_space<vmem>>, %arg6: memref<1x16x128xf32, #tpu.memory_space<vmem>>) attributes {dimension_semantics = [#tpu.dimension_semantics<parallel>], iteration_bounds = array<i64: 2>, scalar_prefetch = 0 : i64, scratch_operands = 0 : i64, tpu.core_type = #tpu.core_type<tc>, window_params = [{transform_indices = @transform_0, window_bounds = array<i64: 1, 16, 128>}, {pipeline_mode = #tpu.pipeline_mode<synchronous>, transform_indices = @transform_1, window_bounds = array<i64: 3, 128, 128>}, {pipeline_mode = #tpu.pipeline_mode<synchronous>, transform_indices = @transform_2, window_bounds = array<i64: 1, 128>}, {pipeline_mode = #tpu.pipeline_mode<synchronous>, transform_indices = @transform_3, window_bounds = array<i64: 3, 128, 128>}, {pipeline_mode = #tpu.pipeline_mode<synchronous>, transform_indices = @transform_4, window_bounds = array<i64: 1, 128>}, {transform_indices = @transform_5, window_bounds = array<i64: 1, 16, 128>}]} {
    %c0 = arith.constant 0 : index
    %c0_0 = arith.constant 0 : index
    %c0_1 = arith.constant 0 : index
    %0 = vector.load %arg1[%c0, %c0_0, %c0_1] : memref<1x16x128xbf16, #tpu.memory_space<vmem>>, vector<1x16x128xbf16>
    %1 = vector.shape_cast %0 : vector<1x16x128xbf16> to vector<16x128xbf16>
    %c0_2 = arith.constant 0 : index
    %c0_3 = arith.constant 0 : index
    %c0_4 = arith.constant 0 : index
    %2 = vector.load %arg2[%c0_2, %c0_3, %c0_4] : memref<3x128x128xbf16, #tpu.memory_space<vmem>>, vector<1x128x128xbf16>
    %3 = vector.shape_cast %2 : vector<1x128x128xbf16> to vector<128x128xbf16>
    %cst = arith.constant dense<0.000000e+00> : vector<16x128xf32>
    %4 = tpu.matmul %1, %3, %cst {dimension_numbers = #tpu.dot_dimension_numbers<[1], [0], [0], [1], [0, 0, 1, 1], [], []>} : vector<16x128xbf16>, vector<128x128xbf16>, vector<16x128xf32> -> vector<16x128xf32>
    %c1 = arith.constant 1 : index
    %c0_5 = arith.constant 0 : index
    %c0_6 = arith.constant 0 : index
    %5 = vector.load %arg2[%c1, %c0_5, %c0_6] : memref<3x128x128xbf16, #tpu.memory_space<vmem>>, vector<1x128x128xbf16>
    %6 = vector.shape_cast %5 : vector<1x128x128xbf16> to vector<128x128xbf16>
    %cst_7 = arith.constant dense<0.000000e+00> : vector<16x128xf32>
    %7 = tpu.matmul %1, %6, %cst_7 {dimension_numbers = #tpu.dot_dimension_numbers<[1], [0], [0], [1], [0, 0, 1, 1], [], []>} : vector<16x128xbf16>, vector<128x128xbf16>, vector<16x128xf32> -> vector<16x128xf32>
    %c2 = arith.constant 2 : index
    %c0_8 = arith.constant 0 : index
    %c0_9 = arith.constant 0 : index
    %8 = vector.load %arg2[%c2, %c0_8, %c0_9] : memref<3x128x128xbf16, #tpu.memory_space<vmem>>, vector<1x128x128xbf16>
    %9 = vector.shape_cast %8 : vector<1x128x128xbf16> to vector<128x128xbf16>
    %cst_10 = arith.constant dense<0.000000e+00> : vector<16x128xf32>
    %10 = tpu.matmul %1, %9, %cst_10 {dimension_numbers = #tpu.dot_dimension_numbers<[1], [0], [0], [1], [0, 0, 1, 1], [], []>} : vector<16x128xbf16>, vector<128x128xbf16>, vector<16x128xf32> -> vector<16x128xf32>
    %cst_11 = arith.constant 0.000000e+00 : f32
    %11 = vector.broadcast %cst_11 : f32 to vector<1x128xf32>
    %12 = vector.extract_strided_slice %4 {offsets = [0, 0], sizes = [15, 128], strides = [1, 1]} : vector<16x128xf32> to vector<15x128xf32>
    %13 = tpu.concatenate %11, %12 in 0 : vector<1x128xf32>, vector<15x128xf32> -> vector<16x128xf32>
    %14 = vector.extract_strided_slice %10 {offsets = [1, 0], sizes = [15, 128], strides = [1, 1]} : vector<16x128xf32> to vector<15x128xf32>
    %15 = tpu.concatenate %14, %11 in 0 : vector<15x128xf32>, vector<1x128xf32> -> vector<16x128xf32>
    %16 = arith.addf %7, %13 : vector<16x128xf32>
    %17 = arith.addf %16, %15 : vector<16x128xf32>
    %c0_12 = arith.constant 0 : index
    %c0_13 = arith.constant 0 : index
    %18 = vector.load %arg3[%c0_12, %c0_13] : memref<1x128xf32, #tpu.memory_space<vmem>>, vector<1x128xf32>
    %19 = vector.broadcast %18 : vector<1x128xf32> to vector<16x128xf32>
    %20 = arith.addf %17, %19 : vector<16x128xf32>
    %cst_14 = arith.constant 0.000000e+00 : f32
    %21 = vector.broadcast %cst_14 : f32 to vector<16x128xf32>
    %22 = arith.maximumf %20, %21 : vector<16x128xf32>
    %23 = arith.truncf %22 : vector<16x128xf32> to vector<16x128xbf16>
    %c0_15 = arith.constant 0 : index
    %c0_16 = arith.constant 0 : index
    %c0_17 = arith.constant 0 : index
    %24 = vector.load %arg4[%c0_15, %c0_16, %c0_17] : memref<3x128x128xbf16, #tpu.memory_space<vmem>>, vector<1x128x128xbf16>
    %25 = vector.shape_cast %24 : vector<1x128x128xbf16> to vector<128x128xbf16>
    %cst_18 = arith.constant dense<0.000000e+00> : vector<16x128xf32>
    %26 = tpu.matmul %23, %25, %cst_18 {dimension_numbers = #tpu.dot_dimension_numbers<[1], [0], [0], [1], [0, 0, 1, 1], [], []>} : vector<16x128xbf16>, vector<128x128xbf16>, vector<16x128xf32> -> vector<16x128xf32>
    %c1_19 = arith.constant 1 : index
    %c0_20 = arith.constant 0 : index
    %c0_21 = arith.constant 0 : index
    %27 = vector.load %arg4[%c1_19, %c0_20, %c0_21] : memref<3x128x128xbf16, #tpu.memory_space<vmem>>, vector<1x128x128xbf16>
    %28 = vector.shape_cast %27 : vector<1x128x128xbf16> to vector<128x128xbf16>
    %cst_22 = arith.constant dense<0.000000e+00> : vector<16x128xf32>
    %29 = tpu.matmul %23, %28, %cst_22 {dimension_numbers = #tpu.dot_dimension_numbers<[1], [0], [0], [1], [0, 0, 1, 1], [], []>} : vector<16x128xbf16>, vector<128x128xbf16>, vector<16x128xf32> -> vector<16x128xf32>
    %c2_23 = arith.constant 2 : index
    %c0_24 = arith.constant 0 : index
    %c0_25 = arith.constant 0 : index
    %30 = vector.load %arg4[%c2_23, %c0_24, %c0_25] : memref<3x128x128xbf16, #tpu.memory_space<vmem>>, vector<1x128x128xbf16>
    %31 = vector.shape_cast %30 : vector<1x128x128xbf16> to vector<128x128xbf16>
    %cst_26 = arith.constant dense<0.000000e+00> : vector<16x128xf32>
    %32 = tpu.matmul %23, %31, %cst_26 {dimension_numbers = #tpu.dot_dimension_numbers<[1], [0], [0], [1], [0, 0, 1, 1], [], []>} : vector<16x128xbf16>, vector<128x128xbf16>, vector<16x128xf32> -> vector<16x128xf32>
    %cst_27 = arith.constant 0.000000e+00 : f32
    %33 = vector.broadcast %cst_27 : f32 to vector<1x128xf32>
    %34 = vector.extract_strided_slice %26 {offsets = [0, 0], sizes = [15, 128], strides = [1, 1]} : vector<16x128xf32> to vector<15x128xf32>
    %35 = tpu.concatenate %33, %34 in 0 : vector<1x128xf32>, vector<15x128xf32> -> vector<16x128xf32>
    %36 = vector.extract_strided_slice %32 {offsets = [1, 0], sizes = [15, 128], strides = [1, 1]} : vector<16x128xf32> to vector<15x128xf32>
    %37 = tpu.concatenate %36, %33 in 0 : vector<15x128xf32>, vector<1x128xf32> -> vector<16x128xf32>
    %38 = arith.addf %29, %35 : vector<16x128xf32>
    %39 = arith.addf %38, %37 : vector<16x128xf32>
    %c0_28 = arith.constant 0 : index
    %c0_29 = arith.constant 0 : index
    %40 = vector.load %arg5[%c0_28, %c0_29] : memref<1x128xf32, #tpu.memory_space<vmem>>, vector<1x128xf32>
    %41 = vector.broadcast %40 : vector<1x128xf32> to vector<16x128xf32>
    %42 = arith.addf %39, %41 : vector<16x128xf32>
    %43 = arith.extf %1 : vector<16x128xbf16> to vector<16x128xf32>
    %44 = arith.addf %42, %43 : vector<16x128xf32>
    %cst_30 = arith.constant 0.000000e+00 : f32
    %45 = vector.broadcast %cst_30 : f32 to vector<16x128xf32>
    %46 = arith.maximumf %44, %45 : vector<16x128xf32>
    %47 = vector.shape_cast %46 : vector<16x128xf32> to vector<1x16x128xf32>
    %c0_31 = arith.constant 0 : index
    %c0_32 = arith.constant 0 : index
    %c0_33 = arith.constant 0 : index
    %48 = vector.load %arg6[%c0_31, %c0_32, %c0_33] : memref<1x16x128xf32, #tpu.memory_space<vmem>>, vector<1x16x128xf32>
    tpu.vector_store %arg6[%c0_31, %c0_32, %c0_33], %47 {strides = array<i32>} : memref<1x16x128xf32, #tpu.memory_space<vmem>>, vector<1x16x128xf32>,
    return
  }
  func.func @transform_0(%arg0: i32) -> (i32, i32, i32) {
    %c0_i32 = arith.constant 0 : i32
    %c0_i32_0 = arith.constant 0 : i32
    %c0_i32_1 = arith.constant 0 : i32
    return %arg0, %c0_i32, %c0_i32_0 : i32, i32, i32
  }
  func.func @transform_1(%arg0: i32) -> (i32, i32, i32) {
    %c0_i32 = arith.constant 0 : i32
    %c0_i32_0 = arith.constant 0 : i32
    %c0_i32_1 = arith.constant 0 : i32
    %c0_i32_2 = arith.constant 0 : i32
    return %c0_i32, %c0_i32_0, %c0_i32_1 : i32, i32, i32
  }
  func.func @transform_2(%arg0: i32) -> (i32, i32) {
    %c0_i32 = arith.constant 0 : i32
    %c0_i32_0 = arith.constant 0 : i32
    %c0_i32_1 = arith.constant 0 : i32
    return %c0_i32, %c0_i32_0 : i32, i32
  }
  func.func @transform_3(%arg0: i32) -> (i32, i32, i32) {
    %c0_i32 = arith.constant 0 : i32
    %c0_i32_0 = arith.constant 0 : i32
    %c0_i32_1 = arith.constant 0 : i32
    %c0_i32_2 = arith.constant 0 : i32
    return %c0_i32, %c0_i32_0, %c0_i32_1 : i32, i32, i32
  }
  func.func @transform_4(%arg0: i32) -> (i32, i32) {
    %c0_i32 = arith.constant 0 : i32
    %c0_i32_0 = arith.constant 0 : i32
    %c0_i32_1 = arith.constant 0 : i32
    return %c0_i32, %c0_i32_0 : i32, i32
  }
  func.func @transform_5(%arg0: i32) -> (i32, i32, i32) {
    %c0_i32 = arith.constant 0 : i32
    %c0_i32_0 = arith.constant 0 : i32
    %c0_i32_1 = arith.constant 0 : i32
    return %arg0, %c0_i32, %c0_i32_0 : i32, i32, i32
  }
}

</mosaic_0001>

<llo_original>
// kernel: tpu_custom_call.1
$region0: #{tpu_custom_call.1}
  #allocation0 [shape = 'u32[]', space=smem, size = 0x4, offset = 0x4, fixed_abs, tag = 'smem constant byte address 0x4 - core index']
  #allocation1 [shape = 'u32[144,128]{1,0:T(1,128)}', space=vmem, size = 0x12000, scoped, tag = 'internal scratch']
  %s0 = inlined_call_operand.hbm [shape: bf16[2,16,128], index: 0, kind: input, shape index: {}]
  %s1 = inlined_call_operand.hbm [shape: bf16[3,128,128], index: 1, kind: input, shape index: {}]
  %s2 = inlined_call_operand.vmem [shape: f32[1,128], index: 2, kind: input, shape index: {}]
  %s3 = inlined_call_operand.hbm [shape: bf16[3,128,128], index: 3, kind: input, shape index: {}]
  %s4 = inlined_call_operand.vmem [shape: f32[1,128], index: 4, kind: input, shape index: {}]
  %s5 = inlined_call_operand.hbm [shape: f32[2,16,128], index: 5, kind: output, shape index: {}]
  %s6 = sld [smem:[#allocation0]]
  $region65: #{tpu_custom_call.1} parent=0
    _
  %s8 = ssub.s32 1, %s6
  %s9 = scalar_select 0, %s8, %s6
  $region1: #{tpu_custom_call.1} parent=0
    #allocation2 [shape = 'u8[8192]{0}', space=vmem, size = 0x2000, scoped, tag = 'input window, operand 0']
    #allocation3 [shape = 's32[2]{0}', space=sflag, size = 0x8, scoped, tag = 'scoped memory for tpu_custom_call.1']
    #allocation4 [shape = 's32[2]{0}', space=sflag, size = 0x8, scoped, tag = 'scoped memory for tpu_custom_call.1']
    #allocation5 [shape = 'u8[98304]{0}', space=vmem, size = 0x18000, scoped, tag = 'input window, operand 1, single buffered']
    #allocation6 [shape = 's32[1]{0}', space=sflag, size = 0x4, scoped, tag = 'scoped memory for tpu_custom_call.1']
    #allocation7 [shape = 'u8[98304]{0}', space=vmem, size = 0x18000, scoped, tag = 'input window, operand 3, single buffered']
    #allocation8 [shape = 'u8[16384]{0}', space=vmem, size = 0x4000, scoped, tag = 'output window, operand 0']
    %10 = vsyncpa [#allocation3], 0
    %s11 = scalar_lea.sflag [#allocation3], 1
    %12 = vsyncpa %s11, 0
    %13 = vsyncpa [#allocation6], 0
    %14 = vsyncpa [#allocation4], 0
    %s15 = scalar_lea.sflag [#allocation4], 1
    %16 = vsyncpa %s15, 0
    loop: start=0, step=1, limit=4
    $region2: #{tpu_custom_call.1} parent=1 // loop_pre_header
      _
    $region3: #{tpu_custom_call.1} parent=1 // loop_header
      %s18 = sphi 0, %s22
      %p19 = scmp.ge.s32.totalorder %s18, 4
      %s28 = sphi 0, %s30
      %s31 = sphi 0, %s28
      %s32 = sphi 0, %s31
      %s48 = sphi 0, %s32
      %s52 = sphi 0, %s52
      %s54 = sphi 0, %s52
      %s55 = sphi 0, %s54
      %s69 = sphi 0, %s55
      %s73 = sphi 0, %s73
      %s75 = sphi 0, %s73
      %s76 = sphi 0, %s75
      %s90 = sphi 0, %s76
      %s94 = sphi 0, %s94
      %s96 = sphi 0, %s94
      %s97 = sphi 0, %s96
      %s111 = sphi 0, %s97
      %s115 = sphi 0, %s115
      %s117 = sphi 0, %s115
      %s118 = sphi 0, %s117
      %s132 = sphi 0, %s118
      %s138 = sphi 0, %s140
      %s141 = sphi 0, %s138
      %s142 = sphi 0, %s141
      %s158 = sphi 0, %s142
    $region4: #{tpu_custom_call.1} parent=1 // loop_header_branch
      %21 = sbr.rel (%p19) target = $region8
    $region5: #{tpu_custom_call.1} parent=1 // loop_body
      %s23 = ssub.s32 %s18, 1
      %s24 = ssub.s32 %s18, 2
      %s25 = sadd.s32 %s18, 1
      %s26 = ssub.s32 %s18, %s25
      %p27 = scmp.eq.s32.totalorder %s26, 0
      %s29 = sadd.s32 %s28, 1
      %s30 = scalar_select %p27, %s28, %s29
      %p33 = pneg %p27
      %p34 = scmp.eq.s32.totalorder %s18, 1
      %p35 = por %p33, %p34
      %p36 = scmp.ne.s32.totalorder %s28, %s31
      %p37 = scmp.eq.s32.totalorder %s18, 0
      %p38 = por %p36, %p37
      %p39 = scmp.ne.s32.totalorder %s28, %s31
      %p40 = scmp.eq.s32.totalorder %s23, 1
      %p41 = por %p39, %p40
      %p42 = scmp.ne.s32.totalorder %s31, %s32
      %p43 = scmp.eq.s32.totalorder %s23, 0
      %p44 = por %p42, %p43
      %p45 = scmp.ne.s32.totalorder %s31, %s32
      %p46 = scmp.eq.s32.totalorder %s24, 1
      %p47 = por %p45, %p46
      %p49 = scmp.ne.s32.totalorder %s32, %s48
      %p50 = scmp.eq.s32.totalorder %s24, 0
      %p51 = por %p49, %p50
      %s53 = sadd.s32 %s52, 1
      %p56 = scmp.eq.s32.totalorder %s18, 1
      %p57 = scmp.ne.s32.totalorder %s52, %s54
      %p58 = scmp.eq.s32.totalorder %s18, 0
      %p59 = por %p57, %p58
      %p60 = scmp.ne.s32.totalorder %s52, %s54
      %p61 = scmp.eq.s32.totalorder %s23, 1
      %p62 = por %p60, %p61
      %p63 = scmp.ne.s32.totalorder %s54, %s55
      %p64 = scmp.eq.s32.totalorder %s23, 0
      %p65 = por %p63, %p64
      %p66 = scmp.ne.s32.totalorder %s54, %s55
      %p67 = scmp.eq.s32.totalorder %s24, 1
      %p68 = por %p66, %p67
      %p70 = scmp.ne.s32.totalorder %s55, %s69
      %p71 = scmp.eq.s32.totalorder %s24, 0
      %p72 = por %p70, %p71
      %s74 = sadd.s32 %s73, 1
      %p77 = scmp.eq.s32.totalorder %s18, 1
      %p78 = scmp.ne.s32.totalorder %s73, %s75
      %p79 = scmp.eq.s32.totalorder %s18, 0
      %p80 = por %p78, %p79
      %p81 = scmp.ne.s32.totalorder %s73, %s75
      %p82 = scmp.eq.s32.totalorder %s23, 1
      %p83 = por %p81, %p82
      %p84 = scmp.ne.s32.totalorder %s75, %s76
      %p85 = scmp.eq.s32.totalorder %s23, 0
      %p86 = por %p84, %p85
      %p87 = scmp.ne.s32.totalorder %s75, %s76
      %p88 = scmp.eq.s32.totalorder %s24, 1
      %p89 = por %p87, %p88
      %p91 = scmp.ne.s32.totalorder %s76, %s90
      %p92 = scmp.eq.s32.totalorder %s24, 0
      %p93 = por %p91, %p92
      %s95 = sadd.s32 %s94, 1
      %p98 = scmp.eq.s32.totalorder %s18, 1
      %p99 = scmp.ne.s32.totalorder %s94, %s96
      %p100 = scmp.eq.s32.totalorder %s18, 0
      %p101 = por %p99, %p100
      %p102 = scmp.ne.s32.totalorder %s94, %s96
      %p103 = scmp.eq.s32.totalorder %s23, 1
      %p104 = por %p102, %p103
      %p105 = scmp.ne.s32.totalorder %s96, %s97
      %p106 = scmp.eq.s32.totalorder %s23, 0
      %p107 = por %p105, %p106
      %p108 = scmp.ne.s32.totalorder %s96, %s97
      %p109 = scmp.eq.s32.totalorder %s24, 1
      %p110 = por %p108, %p109
      %p112 = scmp.ne.s32.totalorder %s97, %s111
      %p113 = scmp.eq.s32.totalorder %s24, 0
      %p114 = por %p112, %p113
      %s116 = sadd.s32 %s115, 1
      %p119 = scmp.eq.s32.totalorder %s18, 1
      %p120 = scmp.ne.s32.totalorder %s115, %s117
      %p121 = scmp.eq.s32.totalorder %s18, 0
      %p122 = por %p120, %p121
      %p123 = scmp.ne.s32.totalorder %s115, %s117
      %p124 = scmp.eq.s32.totalorder %s23, 1
      %p125 = por %p123, %p124
      %p126 = scmp.ne.s32.totalorder %s117, %s118
      %p127 = scmp.eq.s32.totalorder %s23, 0
      %p128 = por %p126, %p127
      %p129 = scmp.ne.s32.totalorder %s117, %s118
      %p130 = scmp.eq.s32.totalorder %s24, 1
      %p131 = por %p129, %p130
      %p133 = scmp.ne.s32.totalorder %s118, %s132
      %p134 = scmp.eq.s32.totalorder %s24, 0
      %p135 = por %p133, %p134
      %s136 = ssub.s32 %s18, %s25
      %p137 = scmp.eq.s32.totalorder %s136, 0
      %s139 = sadd.s32 %s138, 1
      %s140 = scalar_select %p137, %s138, %s139
      %p143 = pneg %p137
      %p144 = scmp.eq.s32.totalorder %s18, 1
      %p145 = por %p143, %p144
      %p146 = scmp.ne.s32.totalorder %s138, %s141
      %p147 = scmp.eq.s32.totalorder %s18, 0
      %p148 = por %p146, %p147
      %p149 = scmp.ne.s32.totalorder %s138, %s141
      %p150 = scmp.eq.s32.totalorder %s23, 1
      %p151 = por %p149, %p150
      %p152 = scmp.ne.s32.totalorder %s141, %s142
      %p153 = scmp.eq.s32.totalorder %s23, 0
      %p154 = por %p152, %p153
      %p155 = scmp.ne.s32.totalorder %s141, %s142
      %p156 = scmp.eq.s32.totalorder %s24, 1
      %p157 = por %p155, %p156
      %p159 = scmp.ne.s32.totalorder %s142, %s158
      %p160 = scmp.eq.s32.totalorder %s24, 0
      %p161 = por %p159, %p160
      %p162 = scmp.le.s32.totalorder 1, %s18
      %p163 = scmp.lt.s32.totalorder %s18, 3
      %p164 = pnand %p162, %p163
      %p165 = pneg %p164
      // Predicated region
      $region9: #{tpu_custom_call.1} parent=5 // pred_check
        _
      $region10: #{tpu_custom_call.1} parent=5 // pred_check_branch
        %167 = sbr.rel (%p164) target = $region12
      $region11: #{tpu_custom_call.1} parent=5 // pred_region
        %s168 = ssub.s32 %s18, 1
        // Predicated region
        $region13: #{tpu_custom_call.1} parent=11 // pred_check
          %p169 = pneg %p65
        $region14: #{tpu_custom_call.1} parent=11 // pred_check_branch
          %171 = sbr.rel (%p169) target = $region16
        $region15: #{tpu_custom_call.1} parent=11 // pred_region
          %s173 = ssub.s32 3072, 3072
          %174 = vsyncadd [#allocation6], %s173
          %s175 = sshll.u32 [#allocation5], 4
          %s176 = int_to_ptr.vmem [resolvable:$true] %s175
          %181 = dma.hbm_to_vmem [thread:$0]  %s1, 3072, %s176, [#allocation6], 64, 64, 4
        $region16: #{tpu_custom_call.1} parent=11 // pred_fallthru
          _
        // Predicated region
        $region17: #{tpu_custom_call.1} parent=11 // pred_check
          %p182 = pneg %p86
        $region18: #{tpu_custom_call.1} parent=11 // pred_check_branch
          %184 = sbr.rel (%p182) target = $region20
        $region19: #{tpu_custom_call.1} parent=11 // pred_region
          _
        $region20: #{tpu_custom_call.1} parent=11 // pred_fallthru
          _
        // Predicated region
        $region21: #{tpu_custom_call.1} parent=11 // pred_check
          %p185 = pneg %p107
        $region22: #{tpu_custom_call.1} parent=11 // pred_check_branch
          %187 = sbr.rel (%p185) target = $region24
        $region23: #{tpu_custom_call.1} parent=11 // pred_region
          %s189 = ssub.s32 3072, 3072
          %190 = vsyncadd [#allocation6], %s189
          %s191 = sshll.u32 [#allocation7], 4
          %s192 = int_to_ptr.vmem [resolvable:$true] %s191
          %197 = dma.hbm_to_vmem [thread:$0]  %s3, 3072, %s192, [#allocation6], 64, 64, 4
        $region24: #{tpu_custom_call.1} parent=11 // pred_fallthru
          _
        // Predicated region
        $region25: #{tpu_custom_call.1} parent=11 // pred_check
          %p198 = pneg %p128
        $region26: #{tpu_custom_call.1} parent=11 // pred_check_branch
          %200 = sbr.rel (%p198) target = $region28
        $region27: #{tpu_custom_call.1} parent=11 // pred_region
          _
        $region28: #{tpu_custom_call.1} parent=11 // pred_fallthru
          _
      $region12: #{tpu_custom_call.1} parent=5 // pred_fallthru
        _
      %p201 = scmp.lt.s32.totalorder %s18, 2
      // Predicated region
      $region29: #{tpu_custom_call.1} parent=5 // pred_check
        %p202 = pneg %p201
      $region30: #{tpu_custom_call.1} parent=5 // pred_check_branch
        %204 = sbr.rel (%p202) target = $region32
      $region31: #{tpu_custom_call.1} parent=5 // pred_region
        // Predicated region
        $region33: #{tpu_custom_call.1} parent=31 // pred_check
          %p205 = pneg %p38
        $region34: #{tpu_custom_call.1} parent=31 // pred_check_branch
          %207 = sbr.rel (%p205) target = $region36
        $region35: #{tpu_custom_call.1} parent=31 // pred_region
          %s208 = sand.u32 %s28, 1
          %s209 = scalar_lea.sflag [#allocation3], %s208
          %s210 = sand.u32 %s28, 1
          %s211 = smul.addr %s210, 8
          %s212 = scalar_lea.vmem [#allocation2], %s211
          %s214 = ssub.s32 128, 128
          %215 = vsyncadd %s209, %s214
          %s216 = smul.addr %s18, 2
          %s217 = smul.addr %s216, 64
          %s218 = scalar_lea.hbm %s0, %s217
          %s219 = sshll.u32 %s212, 4
          %s220 = int_to_ptr.vmem [resolvable:$true] %s219
          %225 = dma.hbm_to_vmem [thread:$0]  %s218, 128, %s220, %s209, 64, 64, 4
        $region36: #{tpu_custom_call.1} parent=31 // pred_fallthru
          _
      $region32: #{tpu_custom_call.1} parent=5 // pred_fallthru
        _
      %p226 = scmp.le.s32.totalorder 1, %s18
      %p227 = scmp.lt.s32.totalorder %s18, 3
      %p228 = pnand %p226, %p227
      %p229 = pneg %p228
      // Predicated region
      $region37: #{tpu_custom_call.1} parent=5 // pred_check
        _
      $region38: #{tpu_custom_call.1} parent=5 // pred_check_branch
        %231 = sbr.rel (%p228) target = $region40
      $region39: #{tpu_custom_call.1} parent=5 // pred_region
        %s232 = ssub.s32 %s18, 1
        %s233 = sand.u32 %s31, 1
        %s234 = scalar_lea.sflag [#allocation3], %s233
        %s235 = sand.u32 %s31, 1
        %s236 = smul.addr %s235, 8
        %s237 = scalar_lea.vmem [#allocation2], %s236
        // Predicated region
        $region41: #{tpu_custom_call.1} parent=39 // pred_check
          %p238 = pneg %p44
        $region42: #{tpu_custom_call.1} parent=39 // pred_check_branch
          %240 = sbr.rel (%p238) target = $region44
        $region43: #{tpu_custom_call.1} parent=39 // pred_region
          %241 = dma.done %s234, 128
        $region44: #{tpu_custom_call.1} parent=39 // pred_fallthru
          _
        // Predicated region
        $region45: #{tpu_custom_call.1} parent=39 // pred_check
          %p242 = pneg %p65
        $region46: #{tpu_custom_call.1} parent=39 // pred_check_branch
          %244 = sbr.rel (%p242) target = $region48
        $region47: #{tpu_custom_call.1} parent=39 // pred_region
          %245 = dma.done [#allocation6], 3072
        $region48: #{tpu_custom_call.1} parent=39 // pred_fallthru
          _
        // Predicated region
        $region49: #{tpu_custom_call.1} parent=39 // pred_check
          %p246 = pneg %p107
        $region50: #{tpu_custom_call.1} parent=39 // pred_check_branch
          %248 = sbr.rel (%p246) target = $region52
        $region51: #{tpu_custom_call.1} parent=39 // pred_region
          %249 = dma.done [#allocation6], 3072
        $region52: #{tpu_custom_call.1} parent=39 // pred_fallthru
          _
        %s250 = sand.u32 %s31, 1
        %s251 = scalar_lea.sflag [#allocation3], %s250
        %s252 = sand.u32 %s31, 1
        %s253 = smul.addr %s252, 8
        %s254 = scalar_lea.vmem [#allocation2], %s253
        %p255 = pneg %p44
        %p256 = pneg %p41
        %p257 = pneg %p65
        %p258 = pneg %p62
        %p259 = pneg %p86
        %p260 = pneg %p83
        %p261 = pneg %p107
        %p262 = pneg %p104
        %p263 = pneg %p128
        %p264 = pneg %p125
        %p265 = pneg %p154
        %p266 = pneg %p151
        %s267 = sand.u32 %s141, 1
        %s268 = scalar_lea.sflag [#allocation4], %s267
        %s269 = sand.u32 %s141, 1
        %s270 = smul.addr %s269, 16
        %s271 = scalar_lea.vmem [#allocation8], %s270
        %v273 = vld [vmem:[%s237] sm:$0xf]
        %v274 = vld [vmem:[%s237 + $0x4] sm:$0xf]
        %v275 = vld [vmem:[#allocation5] sm:$0xf]
        %v276 = vld [vmem:[#allocation5 + $0x4] sm:$0xf]
        %v277 = vld [vmem:[#allocation5 + $0x8] sm:$0xf]
        %v278 = vld [vmem:[#allocation5 + $0xc] sm:$0xf]
        %v279 = vld [vmem:[#allocation5 + $0x10] sm:$0xf]
        %v280 = vld [vmem:[#allocation5 + $0x14] sm:$0xf]
        %v281 = vld [vmem:[#allocation5 + $0x18] sm:$0xf]
        %v282 = vld [vmem:[#allocation5 + $0x1c] sm:$0xf]
        %v283 = vld [vmem:[#allocation5 + $0x20] sm:$0xf]
        %v284 = vld [vmem:[#allocation5 + $0x24] sm:$0xf]
        %v285 = vld [vmem:[#allocation5 + $0x28] sm:$0xf]
        %v286 = vld [vmem:[#allocation5 + $0x2c] sm:$0xf]
        %v287 = vld [vmem:[#allocation5 + $0x30] sm:$0xf]
        %v288 = vld [vmem:[#allocation5 + $0x34] sm:$0xf]
        %v289 = vld [vmem:[#allocation5 + $0x38] sm:$0xf]
        %v290 = vld [vmem:[#allocation5 + $0x3c] sm:$0xf]
        %v293 = vunpack.c.l.b16 %v273
        %v294 = vunpack.c.l.b16 %v274
        %v295 = vpack.c.b16 %v294, %v293
        %v313 = vunpack.c.l.b16 %v275
        %v314 = vunpack.c.l.b16 %v276
        %v315 = vunpack.c.l.b16 %v277
        %v316 = vunpack.c.l.b16 %v278
        %v317 = vunpack.c.l.b16 %v279
        %v318 = vunpack.c.l.b16 %v280
        %v319 = vunpack.c.l.b16 %v281
        %v320 = vunpack.c.l.b16 %v282
        %v321 = vunpack.c.l.b16 %v283
        %v322 = vunpack.c.l.b16 %v284
        %v323 = vunpack.c.l.b16 %v285
        %v324 = vunpack.c.l.b16 %v286
        %v325 = vunpack.c.l.b16 %v287
        %v326 = vunpack.c.l.b16 %v288
        %v327 = vunpack.c.l.b16 %v289
        %v328 = vunpack.c.l.b16 %v290
        %v329 = vpack.c.b16 %v314, %v313
        %v330 = vpack.c.b16 %v316, %v315
        %v331 = vpack.c.b16 %v318, %v317
        %v332 = vpack.c.b16 %v320, %v319
        %v333 = vpack.c.b16 %v322, %v321
        %v334 = vpack.c.b16 %v324, %v323
        %v335 = vpack.c.b16 %v326, %v325
        %v336 = vpack.c.b16 %v328, %v327
        %345 = vmatprep.subr.bf16.mxu0 0
        %346 = vmatpush1.bf16.msra.mxu0 %v329
        %347 = vmatprep.subr.bf16.mxu0 0
        %348 = vmatpush1.bf16.msra.mxu0 %v330
        %349 = vmatprep.subr.bf16.mxu0 0
        %350 = vmatpush1.bf16.msra.mxu0 %v331
        %351 = vmatprep.subr.bf16.mxu0 0
        %352 = vmatpush1.bf16.msra.mxu0 %v332
        %353 = vmatprep.subr.bf16.mxu0 0
        %354 = vmatpush1.bf16.msra.mxu0 %v333
        %355 = vmatprep.subr.bf16.mxu0 0
        %356 = vmatpush1.bf16.msra.mxu0 %v334
        %357 = vmatprep.subr.bf16.mxu0 0
        %358 = vmatpush1.bf16.msra.mxu0 %v335
        %359 = vmatprep.subr.bf16.mxu0 0
        %360 = vmatpush1.bf16.msra.mxu0 %v336
        %361 = vmatprep.subr.bf16.mxu0 0
        %362 = vmatpush1.bf16.msra.mxu0 0
        %363 = vmatprep.subr.bf16.mxu0 0
        %364 = vmatpush1.bf16.msra.mxu0 0
        %365 = vmatprep.subr.bf16.mxu0 0
        %366 = vmatpush1.bf16.msra.mxu0 0
        %367 = vmatprep.subr.bf16.mxu0 0
        %368 = vmatpush1.bf16.msra.mxu0 0
        %369 = vmatprep.subr.bf16.mxu0 0
        %370 = vmatpush1.bf16.msra.mxu0 0
        %371 = vmatprep.subr.bf16.mxu0 0
        %372 = vmatpush1.bf16.msra.mxu0 0
        %373 = vmatprep.subr.bf16.mxu0 0
        %374 = vmatpush1.bf16.msra.mxu0 0
        %375 = vmatprep.subr.bf16.mxu0 0
        %376 = vmatpush1.bf16.msra.mxu0 0
        %377 = vmatprep.mubr.bf16.mxu0 0
        %378 = vmatmul.mubr.bf16.gmra.mrb[0].mxu0 %v295
        %v379 = vpop.f32.mrb[0].mxu0
        %v380 = vadd.f32 0.0, %v379
        %v381 = vpop.f32.mrb[0].mxu0
        %v382 = vpop.f32.mrb[0].mxu0
        %v383 = vadd.f32 0.0, %v382
        %v384 = vpop.f32.mrb[0].mxu0
        %385 = vdwg.mxu0
        %s386 = scalar_lea.vmem [#allocation5], 64
        %v387 = vld [vmem:[%s386] sm:$0xf]
        %v388 = vld [vmem:[%s386 + $0x4] sm:$0xf]
        %v389 = vld [vmem:[%s386 + $0x8] sm:$0xf]
        %v390 = vld [vmem:[%s386 + $0xc] sm:$0xf]
        %v391 = vld [vmem:[%s386 + $0x10] sm:$0xf]
        %v392 = vld [vmem:[%s386 + $0x14] sm:$0xf]
        %v393 = vld [vmem:[%s386 + $0x18] sm:$0xf]
        %v394 = vld [vmem:[%s386 + $0x1c] sm:$0xf]
        %v395 = vld [vmem:[%s386 + $0x20] sm:$0xf]
        %v396 = vld [vmem:[%s386 + $0x24] sm:$0xf]
        %v397 = vld [vmem:[%s386 + $0x28] sm:$0xf]
        %v398 = vld [vmem:[%s386 + $0x2c] sm:$0xf]
        %v399 = vld [vmem:[%s386 + $0x30] sm:$0xf]
        %v400 = vld [vmem:[%s386 + $0x34] sm:$0xf]
        %v401 = vld [vmem:[%s386 + $0x38] sm:$0xf]
        %v402 = vld [vmem:[%s386 + $0x3c] sm:$0xf]
        %s403 = scalar_lea.vmem [#allocation5], 128
        %v404 = vld [vmem:[%s403] sm:$0xf]
        %v405 = vld [vmem:[%s403 + $0x4] sm:$0xf]
        %v406 = vld [vmem:[%s403 + $0x8] sm:$0xf]
        %v407 = vld [vmem:[%s403 + $0xc] sm:$0xf]
        %v408 = vld [vmem:[%s403 + $0x10] sm:$0xf]
        %v409 = vld [vmem:[%s403 + $0x14] sm:$0xf]
        %v410 = vld [vmem:[%s403 + $0x18] sm:$0xf]
        %v411 = vld [vmem:[%s403 + $0x1c] sm:$0xf]
        %v412 = vld [vmem:[%s403 + $0x20] sm:$0xf]
        %v413 = vld [vmem:[%s403 + $0x24] sm:$0xf]
        %v414 = vld [vmem:[%s403 + $0x28] sm:$0xf]
        %v415 = vld [vmem:[%s403 + $0x2c] sm:$0xf]
        %v416 = vld [vmem:[%s403 + $0x30] sm:$0xf]
        %v417 = vld [vmem:[%s403 + $0x34] sm:$0xf]
        %v418 = vld [vmem:[%s403 + $0x38] sm:$0xf]
        %v419 = vld [vmem:[%s403 + $0x3c] sm:$0xf]
        %v436 = vunpack.c.l.b16 %v404
        %v437 = vunpack.c.l.b16 %v405
        %v438 = vunpack.c.l.b16 %v406
        %v439 = vunpack.c.l.b16 %v407
        %v440 = vunpack.c.l.b16 %v408
        %v441 = vunpack.c.l.b16 %v409
        %v442 = vunpack.c.l.b16 %v410
        %v443 = vunpack.c.l.b16 %v411
        %v444 = vunpack.c.l.b16 %v412
        %v445 = vunpack.c.l.b16 %v413
        %v446 = vunpack.c.l.b16 %v414
        %v447 = vunpack.c.l.b16 %v415
        %v448 = vunpack.c.l.b16 %v416
        %v449 = vunpack.c.l.b16 %v417
        %v450 = vunpack.c.l.b16 %v418
        %v451 = vunpack.c.l.b16 %v419
        %v452 = vpack.c.b16 %v437, %v436
        %v453 = vpack.c.b16 %v439, %v438
        %v454 = vpack.c.b16 %v441, %v440
        %v455 = vpack.c.b16 %v443, %v442
        %v456 = vpack.c.b16 %v445, %v444
        %v457 = vpack.c.b16 %v447, %v446
        %v458 = vpack.c.b16 %v449, %v448
        %v459 = vpack.c.b16 %v451, %v450
        %468 = vmatprep.subr.bf16.mxu0 0
        %469 = vmatpush1.bf16.msra.mxu0 %v452
        %470 = vmatprep.subr.bf16.mxu0 0
        %471 = vmatpush1.bf16.msra.mxu0 %v453
        %472 = vmatprep.subr.bf16.mxu0 0
        %473 = vmatpush1.bf16.msra.mxu0 %v454
        %474 = vmatprep.subr.bf16.mxu0 0
        %475 = vmatpush1.bf16.msra.mxu0 %v455
        %476 = vmatprep.subr.bf16.mxu0 0
        %477 = vmatpush1.bf16.msra.mxu0 %v456
        %478 = vmatprep.subr.bf16.mxu0 0
        %479 = vmatpush1.bf16.msra.mxu0 %v457
        %480 = vmatprep.subr.bf16.mxu0 0
        %481 = vmatpush1.bf16.msra.mxu0 %v458
        %482 = vmatprep.subr.bf16.mxu0 0
        %483 = vmatpush1.bf16.msra.mxu0 %v459
        %484 = vmatprep.subr.bf16.mxu0 0
        %485 = vmatpush1.bf16.msra.mxu0 0
        %486 = vmatprep.subr.bf16.mxu0 0
        %487 = vmatpush1.bf16.msra.mxu0 0
        %488 = vmatprep.subr.bf16.mxu0 0
        %489 = vmatpush1.bf16.msra.mxu0 0
        %490 = vmatprep.subr.bf16.mxu0 0
        %491 = vmatpush1.bf16.msra.mxu0 0
        %492 = vmatprep.subr.bf16.mxu0 0
        %493 = vmatpush1.bf16.msra.mxu0 0
        %494 = vmatprep.subr.bf16.mxu0 0
        %495 = vmatpush1.bf16.msra.mxu0 0
        %496 = vmatprep.subr.bf16.mxu0 0
        %497 = vmatpush1.bf16.msra.mxu0 0
        %498 = vmatprep.subr.bf16.mxu0 0
        %499 = vmatpush1.bf16.msra.mxu0 0
        %500 = vmatprep.mubr.bf16.mxu0 0
        %501 = vmatmul.mubr.bf16.gmra.mrb[0].mxu0 %v295
        %v502 = vpop.f32.mrb[0].mxu0
        %v503 = vadd.f32 0.0, %v502
        %v504 = vpop.f32.mrb[0].mxu0
        %v505 = vpop.f32.mrb[0].mxu0
        %v506 = vadd.f32 0.0, %v505
        %v507 = vpop.f32.mrb[0].mxu0
        %508 = vdwg.mxu0
        %vm511 = vcmask 1040384
        %v512 = vrot.slane %v380, 7
        %v513 = vrot.slane %v383, 7
        %v514 = vsel %vm511, %v512, %v513
        %v517 = vsel %vm511, 0.0, %v512
        %vm520 = vcmask 1046528
        %v521 = vrot.slane %v503, 1
        %v522 = vrot.slane %v506, 1
        %v523 = vsel %vm520, %v521, %v522
        %v526 = vsel %vm520, %v522, 0.0
        %v543 = vunpack.c.l.b16 %v387
        %v544 = vunpack.c.l.b16 %v388
        %v545 = vunpack.c.l.b16 %v389
        %v546 = vunpack.c.l.b16 %v390
        %v547 = vunpack.c.l.b16 %v391
        %v548 = vunpack.c.l.b16 %v392
        %v549 = vunpack.c.l.b16 %v393
        %v550 = vunpack.c.l.b16 %v394
        %v551 = vunpack.c.l.b16 %v395
        %v552 = vunpack.c.l.b16 %v396
        %v553 = vunpack.c.l.b16 %v397
        %v554 = vunpack.c.l.b16 %v398
        %v555 = vunpack.c.l.b16 %v399
        %v556 = vunpack.c.l.b16 %v400
        %v557 = vunpack.c.l.b16 %v401
        %v558 = vunpack.c.l.b16 %v402
        %v559 = vpack.c.b16 %v544, %v543
        %v560 = vpack.c.b16 %v546, %v545
        %v561 = vpack.c.b16 %v548, %v547
        %v562 = vpack.c.b16 %v550, %v549
        %v563 = vpack.c.b16 %v552, %v551
        %v564 = vpack.c.b16 %v554, %v553
        %v565 = vpack.c.b16 %v556, %v555
        %v566 = vpack.c.b16 %v558, %v557
        %575 = vmatprep.subr.bf16.mxu0 0
        %576 = vmatpush1.bf16.msra.mxu0 %v559
        %577 = vmatprep.subr.bf16.mxu0 0
        %578 = vmatpush1.bf16.msra.mxu0 %v560
        %579 = vmatprep.subr.bf16.mxu0 0
        %580 = vmatpush1.bf16.msra.mxu0 %v561
        %581 = vmatprep.subr.bf16.mxu0 0
        %582 = vmatpush1.bf16.msra.mxu0 %v562
        %583 = vmatprep.subr.bf16.mxu0 0
        %584 = vmatpush1.bf16.msra.mxu0 %v563
        %585 = vmatprep.subr.bf16.mxu0 0
        %586 = vmatpush1.bf16.msra.mxu0 %v564
        %587 = vmatprep.subr.bf16.mxu0 0
        %588 = vmatpush1.bf16.msra.mxu0 %v565
        %589 = vmatprep.subr.bf16.mxu0 0
        %590 = vmatpush1.bf16.msra.mxu0 %v566
        %591 = vmatprep.subr.bf16.mxu0 0
        %592 = vmatpush1.bf16.msra.mxu0 0
        %593 = vmatprep.subr.bf16.mxu0 0
        %594 = vmatpush1.bf16.msra.mxu0 0
        %595 = vmatprep.subr.bf16.mxu0 0
        %596 = vmatpush1.bf16.msra.mxu0 0
        %597 = vmatprep.subr.bf16.mxu0 0
        %598 = vmatpush1.bf16.msra.mxu0 0
        %599 = vmatprep.subr.bf16.mxu0 0
        %600 = vmatpush1.bf16.msra.mxu0 0
        %601 = vmatprep.subr.bf16.mxu0 0
        %602 = vmatpush1.bf16.msra.mxu0 0
        %603 = vmatprep.subr.bf16.mxu0 0
        %604 = vmatpush1.bf16.msra.mxu0 0
        %605 = vmatprep.subr.bf16.mxu0 0
        %606 = vmatpush1.bf16.msra.mxu0 0
        %607 = vmatprep.mubr.bf16.mxu0 0
        %608 = vmatmul.mubr.bf16.gmra.mrb[0].mxu0 %v295
        %v609 = vpop.f32.mrb[0].mxu0
        %v610 = vadd.f32 %v517, %v609
        %v611 = vpop.f32.mrb[0].mxu0
        %v612 = vpop.f32.mrb[0].mxu0
        %v613 = vadd.f32 %v514, %v612
        %v614 = vpop.f32.mrb[0].mxu0
        %615 = vdwg.mxu0
        %v616 = vadd.f32 %v610, %v523
        %v617 = vadd.f32 %v613, %v526
        %v618 = vld [vmem:[%s2] sm:$0x1]
        %v620 = vlaneseq
        %v621 = vshrl.u32 %v620, 7
        %v622 = vsub.s32 0, %v621
        %v623 = vrot.slane %v618, %v622
        %v625 = vadd.f32 %v616, %v623
        %v626 = vadd.f32 %v617, %v623
        %v627 = vmax.f32 %v625, 0.0
        %v628 = vmax.f32 %v626, 0.0
        %v629 = vpack.c.bf16 %v628, %v627
        %v630 = vld [vmem:[#allocation7] sm:$0xf]
        %v631 = vld [vmem:[#allocation7 + $0x4] sm:$0xf]
        %v632 = vld [vmem:[#allocation7 + $0x8] sm:$0xf]
        %v633 = vld [vmem:[#allocation7 + $0xc] sm:$0xf]
        %v634 = vld [vmem:[#allocation7 + $0x10] sm:$0xf]
        %v635 = vld [vmem:[#allocation7 + $0x14] sm:$0xf]
        %v636 = vld [vmem:[#allocation7 + $0x18] sm:$0xf]
        %v637 = vld [vmem:[#allocation7 + $0x1c] sm:$0xf]
        %v638 = vld [vmem:[#allocation7 + $0x20] sm:$0xf]
        %v639 = vld [vmem:[#allocation7 + $0x24] sm:$0xf]
        %v640 = vld [vmem:[#allocation7 + $0x28] sm:$0xf]
        %v641 = vld [vmem:[#allocation7 + $0x2c] sm:$0xf]
        %v642 = vld [vmem:[#allocation7 + $0x30] sm:$0xf]
        %v643 = vld [vmem:[#allocation7 + $0x34] sm:$0xf]
        %v644 = vld [vmem:[#allocation7 + $0x38] sm:$0xf]
        %v645 = vld [vmem:[#allocation7 + $0x3c] sm:$0xf]
        %v662 = vunpack.c.l.b16 %v630
        %v663 = vunpack.c.l.b16 %v631
        %v664 = vunpack.c.l.b16 %v632
        %v665 = vunpack.c.l.b16 %v633
        %v666 = vunpack.c.l.b16 %v634
        %v667 = vunpack.c.l.b16 %v635
        %v668 = vunpack.c.l.b16 %v636
        %v669 = vunpack.c.l.b16 %v637
        %v670 = vunpack.c.l.b16 %v638
        %v671 = vunpack.c.l.b16 %v639
        %v672 = vunpack.c.l.b16 %v640
        %v673 = vunpack.c.l.b16 %v641
        %v674 = vunpack.c.l.b16 %v642
        %v675 = vunpack.c.l.b16 %v643
        %v676 = vunpack.c.l.b16 %v644
        %v677 = vunpack.c.l.b16 %v645
        %v678 = vpack.c.b16 %v663, %v662
        %v679 = vpack.c.b16 %v665, %v664
        %v680 = vpack.c.b16 %v667, %v666
        %v681 = vpack.c.b16 %v669, %v668
        %v682 = vpack.c.b16 %v671, %v670
        %v683 = vpack.c.b16 %v673, %v672
        %v684 = vpack.c.b16 %v675, %v674
        %v685 = vpack.c.b16 %v677, %v676
        %694 = vmatprep.subr.bf16.mxu0 0
        %695 = vmatpush1.bf16.msra.mxu0 %v678
        %696 = vmatprep.subr.bf16.mxu0 0
        %697 = vmatpush1.bf16.msra.mxu0 %v679
        %698 = vmatprep.subr.bf16.mxu0 0
        %699 = vmatpush1.bf16.msra.mxu0 %v680
        %700 = vmatprep.subr.bf16.mxu0 0
        %701 = vmatpush1.bf16.msra.mxu0 %v681
        %702 = vmatprep.subr.bf16.mxu0 0
        %703 = vmatpush1.bf16.msra.mxu0 %v682
        %704 = vmatprep.subr.bf16.mxu0 0
        %705 = vmatpush1.bf16.msra.mxu0 %v683
        %706 = vmatprep.subr.bf16.mxu0 0
        %707 = vmatpush1.bf16.msra.mxu0 %v684
        %708 = vmatprep.subr.bf16.mxu0 0
        %709 = vmatpush1.bf16.msra.mxu0 %v685
        %710 = vmatprep.subr.bf16.mxu0 0
        %711 = vmatpush1.bf16.msra.mxu0 0
        %712 = vmatprep.subr.bf16.mxu0 0
        %713 = vmatpush1.bf16.msra.mxu0 0
        %714 = vmatprep.subr.bf16.mxu0 0
        %715 = vmatpush1.bf16.msra.mxu0 0
        %716 = vmatprep.subr.bf16.mxu0 0
        %717 = vmatpush1.bf16.msra.mxu0 0
        %718 = vmatprep.subr.bf16.mxu0 0
        %719 = vmatpush1.bf16.msra.mxu0 0
        %720 = vmatprep.subr.bf16.mxu0 0
        %721 = vmatpush1.bf16.msra.mxu0 0
        %722 = vmatprep.subr.bf16.mxu0 0
        %723 = vmatpush1.bf16.msra.mxu0 0
        %724 = vmatprep.subr.bf16.mxu0 0
        %725 = vmatpush1.bf16.msra.mxu0 0
        %726 = vmatprep.mubr.bf16.mxu0 0
        %727 = vmatmul.mubr.bf16.gmra.mrb[0].mxu0 %v629
        %v728 = vpop.f32.mrb[0].mxu0
        %v729 = vadd.f32 0.0, %v728
        %v730 = vpop.f32.mrb[0].mxu0
        %v731 = vpop.f32.mrb[0].mxu0
        %v732 = vadd.f32 0.0, %v731
        %v733 = vpop.f32.mrb[0].mxu0
        %734 = vdwg.mxu0
        %s735 = scalar_lea.vmem [#allocation7], 64
        %v736 = vld [vmem:[%s735] sm:$0xf]
        %v737 = vld [vmem:[%s735 + $0x4] sm:$0xf]
        %v738 = vld [vmem:[%s735 + $0x8] sm:$0xf]
        %v739 = vld [vmem:[%s735 + $0xc] sm:$0xf]
        %v740 = vld [vmem:[%s735 + $0x10] sm:$0xf]
        %v741 = vld [vmem:[%s735 + $0x14] sm:$0xf]
        %v742 = vld [vmem:[%s735 + $0x18] sm:$0xf]
        %v743 = vld [vmem:[%s735 + $0x1c] sm:$0xf]
        %v744 = vld [vmem:[%s735 + $0x20] sm:$0xf]
        %v745 = vld [vmem:[%s735 + $0x24] sm:$0xf]
        %v746 = vld [vmem:[%s735 + $0x28] sm:$0xf]
        %v747 = vld [vmem:[%s735 + $0x2c] sm:$0xf]
        %v748 = vld [vmem:[%s735 + $0x30] sm:$0xf]
        %v749 = vld [vmem:[%s735 + $0x34] sm:$0xf]
        %v750 = vld [vmem:[%s735 + $0x38] sm:$0xf]
        %v751 = vld [vmem:[%s735 + $0x3c] sm:$0xf]
        %s752 = scalar_lea.vmem [#allocation7], 128
        %v753 = vld [vmem:[%s752] sm:$0xf]
        %v754 = vld [vmem:[%s752 + $0x4] sm:$0xf]
        %v755 = vld [vmem:[%s752 + $0x8] sm:$0xf]
        %v756 = vld [vmem:[%s752 + $0xc] sm:$0xf]
        %v757 = vld [vmem:[%s752 + $0x10] sm:$0xf]
        %v758 = vld [vmem:[%s752 + $0x14] sm:$0xf]
        %v759 = vld [vmem:[%s752 + $0x18] sm:$0xf]
        %v760 = vld [vmem:[%s752 + $0x1c] sm:$0xf]
        %v761 = vld [vmem:[%s752 + $0x20] sm:$0xf]
        %v762 = vld [vmem:[%s752 + $0x24] sm:$0xf]
        %v763 = vld [vmem:[%s752 + $0x28] sm:$0xf]
        %v764 = vld [vmem:[%s752 + $0x2c] sm:$0xf]
        %v765 = vld [vmem:[%s752 + $0x30] sm:$0xf]
        %v766 = vld [vmem:[%s752 + $0x34] sm:$0xf]
        %v767 = vld [vmem:[%s752 + $0x38] sm:$0xf]
        %v768 = vld [vmem:[%s752 + $0x3c] sm:$0xf]
        %v785 = vunpack.c.l.b16 %v753
        %v786 = vunpack.c.l.b16 %v754
        %v787 = vunpack.c.l.b16 %v755
        %v788 = vunpack.c.l.b16 %v756
        %v789 = vunpack.c.l.b16 %v757
        %v790 = vunpack.c.l.b16 %v758
        %v791 = vunpack.c.l.b16 %v759
        %v792 = vunpack.c.l.b16 %v760
        %v793 = vunpack.c.l.b16 %v761
        %v794 = vunpack.c.l.b16 %v762
        %v795 = vunpack.c.l.b16 %v763
        %v796 = vunpack.c.l.b16 %v764
        %v797 = vunpack.c.l.b16 %v765
        %v798 = vunpack.c.l.b16 %v766
        %v799 = vunpack.c.l.b16 %v767
        %v800 = vunpack.c.l.b16 %v768
        %v801 = vpack.c.b16 %v786, %v785
        %v802 = vpack.c.b16 %v788, %v787
        %v803 = vpack.c.b16 %v790, %v789
        %v804 = vpack.c.b16 %v792, %v791
        %v805 = vpack.c.b16 %v794, %v793
        %v806 = vpack.c.b16 %v796, %v795
        %v807 = vpack.c.b16 %v798, %v797
        %v808 = vpack.c.b16 %v800, %v799
        %817 = vmatprep.subr.bf16.mxu0 0
        %818 = vmatpush1.bf16.msra.mxu0 %v801
        %819 = vmatprep.subr.bf16.mxu0 0
        %820 = vmatpush1.bf16.msra.mxu0 %v802
        %821 = vmatprep.subr.bf16.mxu0 0
        %822 = vmatpush1.bf16.msra.mxu0 %v803
        %823 = vmatprep.subr.bf16.mxu0 0
        %824 = vmatpush1.bf16.msra.mxu0 %v804
        %825 = vmatprep.subr.bf16.mxu0 0
        %826 = vmatpush1.bf16.msra.mxu0 %v805
        %827 = vmatprep.subr.bf16.mxu0 0
        %828 = vmatpush1.bf16.msra.mxu0 %v806
        %829 = vmatprep.subr.bf16.mxu0 0
        %830 = vmatpush1.bf16.msra.mxu0 %v807
        %831 = vmatprep.subr.bf16.mxu0 0
        %832 = vmatpush1.bf16.msra.mxu0 %v808
        %833 = vmatprep.subr.bf16.mxu0 0
        %834 = vmatpush1.bf16.msra.mxu0 0
        %835 = vmatprep.subr.bf16.mxu0 0
        %836 = vmatpush1.bf16.msra.mxu0 0
        %837 = vmatprep.subr.bf16.mxu0 0
        %838 = vmatpush1.bf16.msra.mxu0 0
        %839 = vmatprep.subr.bf16.mxu0 0
        %840 = vmatpush1.bf16.msra.mxu0 0
        %841 = vmatprep.subr.bf16.mxu0 0
        %842 = vmatpush1.bf16.msra.mxu0 0
        %843 = vmatprep.subr.bf16.mxu0 0
        %844 = vmatpush1.bf16.msra.mxu0 0
        %845 = vmatprep.subr.bf16.mxu0 0
        %846 = vmatpush1.bf16.msra.mxu0 0
        %847 = vmatprep.subr.bf16.mxu0 0
        %848 = vmatpush1.bf16.msra.mxu0 0
        %849 = vmatprep.mubr.bf16.mxu0 0
        %850 = vmatmul.mubr.bf16.gmra.mrb[0].mxu0 %v629
        %v851 = vpop.f32.mrb[0].mxu0
        %v852 = vadd.f32 0.0, %v851
        %v853 = vpop.f32.mrb[0].mxu0
        %v854 = vpop.f32.mrb[0].mxu0
        %v855 = vadd.f32 0.0, %v854
        %v856 = vpop.f32.mrb[0].mxu0
        %857 = vdwg.mxu0
        %v860 = vrot.slane %v729, 7
        %v861 = vrot.slane %v732, 7
        %v862 = vsel %vm511, %v860, %v861
        %v865 = vsel %vm511, 0.0, %v860
        %v868 = vrot.slane %v852, 1
        %v869 = vrot.slane %v855, 1
        %v870 = vsel %vm520, %v868, %v869
        %v873 = vsel %vm520, %v869, 0.0
        %v890 = vunpack.c.l.b16 %v736
        %v891 = vunpack.c.l.b16 %v737
        %v892 = vunpack.c.l.b16 %v738
        %v893 = vunpack.c.l.b16 %v739
        %v894 = vunpack.c.l.b16 %v740
        %v895 = vunpack.c.l.b16 %v741
        %v896 = vunpack.c.l.b16 %v742
        %v897 = vunpack.c.l.b16 %v743
        %v898 = vunpack.c.l.b16 %v744
        %v899 = vunpack.c.l.b16 %v745
        %v900 = vunpack.c.l.b16 %v746
        %v901 = vunpack.c.l.b16 %v747
        %v902 = vunpack.c.l.b16 %v748
        %v903 = vunpack.c.l.b16 %v749
        %v904 = vunpack.c.l.b16 %v750
        %v905 = vunpack.c.l.b16 %v751
        %v906 = vpack.c.b16 %v891, %v890
        %v907 = vpack.c.b16 %v893, %v892
        %v908 = vpack.c.b16 %v895, %v894
        %v909 = vpack.c.b16 %v897, %v896
        %v910 = vpack.c.b16 %v899, %v898
        %v911 = vpack.c.b16 %v901, %v900
        %v912 = vpack.c.b16 %v903, %v902
        %v913 = vpack.c.b16 %v905, %v904
        %922 = vmatprep.subr.bf16.mxu0 0
        %923 = vmatpush1.bf16.msra.mxu0 %v906
        %924 = vmatprep.subr.bf16.mxu0 0
        %925 = vmatpush1.bf16.msra.mxu0 %v907
        %926 = vmatprep.subr.bf16.mxu0 0
        %927 = vmatpush1.bf16.msra.mxu0 %v908
        %928 = vmatprep.subr.bf16.mxu0 0
        %929 = vmatpush1.bf16.msra.mxu0 %v909
        %930 = vmatprep.subr.bf16.mxu0 0
        %931 = vmatpush1.bf16.msra.mxu0 %v910
        %932 = vmatprep.subr.bf16.mxu0 0
        %933 = vmatpush1.bf16.msra.mxu0 %v911
        %934 = vmatprep.subr.bf16.mxu0 0
        %935 = vmatpush1.bf16.msra.mxu0 %v912
        %936 = vmatprep.subr.bf16.mxu0 0
        %937 = vmatpush1.bf16.msra.mxu0 %v913
        %938 = vmatprep.subr.bf16.mxu0 0
        %939 = vmatpush1.bf16.msra.mxu0 0
        %940 = vmatprep.subr.bf16.mxu0 0
        %941 = vmatpush1.bf16.msra.mxu0 0
        %942 = vmatprep.subr.bf16.mxu0 0
        %943 = vmatpush1.bf16.msra.mxu0 0
        %944 = vmatprep.subr.bf16.mxu0 0
        %945 = vmatpush1.bf16.msra.mxu0 0
        %946 = vmatprep.subr.bf16.mxu0 0
        %947 = vmatpush1.bf16.msra.mxu0 0
        %948 = vmatprep.subr.bf16.mxu0 0
        %949 = vmatpush1.bf16.msra.mxu0 0
        %950 = vmatprep.subr.bf16.mxu0 0
        %951 = vmatpush1.bf16.msra.mxu0 0
        %952 = vmatprep.subr.bf16.mxu0 0
        %953 = vmatpush1.bf16.msra.mxu0 0
        %954 = vmatprep.mubr.bf16.mxu0 0
        %955 = vmatmul.mubr.bf16.gmra.mrb[0].mxu0 %v629
        %v956 = vpop.f32.mrb[0].mxu0
        %v957 = vadd.f32 %v865, %v956
        %v958 = vpop.f32.mrb[0].mxu0
        %v959 = vpop.f32.mrb[0].mxu0
        %v960 = vadd.f32 %v862, %v959
        %v961 = vpop.f32.mrb[0].mxu0
        %962 = vdwg.mxu0
        %v963 = vadd.f32 %v957, %v870
        %v964 = vadd.f32 %v960, %v873
        %v965 = vld [vmem:[%s4] sm:$0x1]
        %v967 = vlaneseq
        %v968 = vshrl.u32 %v967, 7
        %v969 = vsub.s32 0, %v968
        %v970 = vrot.slane %v965, %v969
        %v972 = vadd.f32 %v963, %v970
        %v973 = vadd.f32 %v964, %v970
        %v974 = vunpack.c.l.bf16 %v273
        %v975 = vunpack.c.l.bf16 %v274
        %v976 = vadd.f32 %v972, %v974
        %v977 = vadd.f32 %v973, %v975
        %v978 = vmax.f32 %v976, 0.0
        %v979 = vmax.f32 %v977, 0.0
        %980 = vst [vmem:[%s271] sm:$0xff] %v978
        %981 = vst [vmem:[%s271 + $0x8] sm:$0xff] %v979
        %s982 = sand.u32 %s141, 1
        %s983 = scalar_lea.sflag [#allocation4], %s982
        %s984 = sand.u32 %s141, 1
        %s985 = smul.addr %s984, 16
        %s986 = scalar_lea.vmem [#allocation8], %s985
        // Predicated region
        $region53: #{tpu_custom_call.1} parent=39 // pred_check
          %p987 = pneg %p151
        $region54: #{tpu_custom_call.1} parent=39 // pred_check_branch
          %989 = sbr.rel (%p987) target = $region56
        $region55: #{tpu_custom_call.1} parent=39 // pred_region
          %s991 = ssub.s32 256, 256
          %992 = vsyncadd %s983, %s991
          %s993 = smul.addr %s23, 2
          %s994 = smul.addr %s993, 128
          %s995 = scalar_lea.hbm %s5, %s994
          %s996 = sshll.u32 %s986, 4
          %s997 = int_to_ptr.vmem [resolvable:$true] %s996
          %1002 = dma.vmem_to_hbm [thread:$0]  %s997, 256, %s995, %s983, 128, 128, 8
        $region56: #{tpu_custom_call.1} parent=39 // pred_fallthru
          _
      $region40: #{tpu_custom_call.1} parent=5 // pred_fallthru
        _
      %p1003 = scmp.le.s32.totalorder 2, %s18
      // Predicated region
      $region57: #{tpu_custom_call.1} parent=5 // pred_check
        %p1004 = pneg %p1003
      $region58: #{tpu_custom_call.1} parent=5 // pred_check_branch
        %1006 = sbr.rel (%p1004) target = $region60
      $region59: #{tpu_custom_call.1} parent=5 // pred_region
        %s1007 = ssub.s32 %s18, 2
        // Predicated region
        $region61: #{tpu_custom_call.1} parent=59 // pred_check
          %p1008 = pneg %p157
        $region62: #{tpu_custom_call.1} parent=59 // pred_check_branch
          %1010 = sbr.rel (%p1008) target = $region64
        $region63: #{tpu_custom_call.1} parent=59 // pred_region
          %s1011 = sand.u32 %s142, 1
          %s1012 = scalar_lea.sflag [#allocation4], %s1011
          %s1013 = sand.u32 %s142, 1
          %s1014 = smul.addr %s1013, 16
          %s1015 = scalar_lea.vmem [#allocation8], %s1014
          %1016 = dma.done %s1012, 256
        $region64: #{tpu_custom_call.1} parent=59 // pred_fallthru
          _
      $region60: #{tpu_custom_call.1} parent=5 // pred_fallthru
        _
    $region6: #{tpu_custom_call.1} parent=1 // loop_footer
      %s22 = sadd.s32 1, %s18
    $region7: #{tpu_custom_call.1} parent=1 // loop_footer_branch
      %17 = sbr.rel target = $region3
    $region8: #{tpu_custom_call.1} parent=1 // loop_exit
      _
    %1017 = vsyncpa [#allocation3], 1
    %s1018 = scalar_lea.sflag [#allocation3], 1
    %1019 = vsyncpa %s1018, 1
    %1020 = vsyncpa [#allocation6], 1
    %1021 = vsyncpa [#allocation4], 1
    %s1022 = scalar_lea.sflag [#allocation4], 1
    %1023 = vsyncpa %s1022, 1

</llo_original>
